<compile_context>
chip_gen: v7x
topology: tpu7x:2x2x1
jax: 0.10.0
libtpu: 0.0.40
codegen_flags: <defaults>
</compile_context>

<pallas_src>
import jax
import jax.numpy as jnp
from jax.experimental import pallas as pl
from jax.experimental.pallas import tpu as pltpu


def _round_up(n, m):
    return ((n + m - 1) // m) * m


def _prelu(x, a):
    # nn.PReLU() with a single shared parameter `a`
    return jnp.where(x > 0, x, a * x)


def classification_net_kernel(
    x_ref,      # (TB, D)      VMEM, pipelined per grid step
    w1_ref,     # (D, H)       VMEM, resident
    b1_ref,     # (1, H)       VMEM, resident
    a1_ref,     # (1, 1)       SMEM scalar (embedding PReLU weight)
    w2t_ref,    # (2, H)       VMEM, resident (embedding linear-2 weight, transposed)
    b2_ref,     # (1, 2)       SMEM scalars
    a2_ref,     # (1, 1)       SMEM scalar (ClassificationNet.nonlinear weight)
    wfc_ref,    # (2, C_pad)   VMEM, resident (fc1 weight, zero-padded columns)
    bfc_ref,    # (1, C_pad)   VMEM, resident (fc1 bias, padded cols = -1e30)
    o_ref,      # (TB, C_pad)  VMEM output tile
):
    a1 = a1_ref[0, 0]
    a2 = a2_ref[0, 0]

    # ---- embedding_net linear 1: the only matmul worth sending to the MXU ----
    h = jnp.dot(x_ref[...], w1_ref[...], preferred_element_type=jnp.float32)
    h = _prelu(h + b1_ref[...], a1)                              # (TB, H)

    # ---- embedding_net linear 2 (N=2): two lane reductions on the VPU/XLU
    #      instead of a degenerate MXU matmul ----
    w2t = w2t_ref[...]                                           # (2, H)
    e0 = jnp.sum(h * w2t[0:1, :], axis=-1, keepdims=True) + b2_ref[0, 0]
    e1 = jnp.sum(h * w2t[1:2, :], axis=-1, keepdims=True) + b2_ref[0, 1]

    # ---- ClassificationNet.nonlinear (PReLU) ----
    o0 = _prelu(e0, a2)                                          # (TB, 1)
    o1 = _prelu(e1, a2)

    # ---- fc1 (K=2 contraction): broadcast multiply-adds on the VPU ----
    wfc = wfc_ref[...]                                           # (2, C_pad)
    z = o0 * wfc[0:1, :] + o1 * wfc[1:2, :] + bfc_ref[...]       # (TB, C_pad)

    # Numerically stable log_softmax. Padded logit columns carry a -1e30 bias,
    # so they contribute nothing to max / logsumexp.
    m = jnp.max(z, axis=-1, keepdims=True)
    lse = m + jnp.log(jnp.sum(jnp.exp(z - m), axis=-1, keepdims=True))
    o_ref[...] = (z - lse).astype(o_ref.dtype)


def classification_net_forward(x, params, *, block_rows=512):
    """Fused ClassificationNet forward.

    x: (B, D) float32; params from init_params.
    Returns (B, n_classes) float32 log-softmax scores.
    """
    w1, b1, a1, w2, b2, a2, wfc, bfc = params
    B, D = x.shape
    H = w1.shape[1]
    C = wfc.shape[1]

    # Lane-dense output: pad the class dim to a multiple of 128. Padded weight
    # columns are zero, padded bias columns are -1e30 -> excluded from softmax.
    C_pad = _round_up(max(C, 128), 128)
    wfc_p = jnp.zeros((2, C_pad), wfc.dtype).at[:, :C].set(wfc)
    bfc_p = jnp.full((1, C_pad), -1e30, bfc.dtype).at[:, :C].set(bfc)

    # Batch tiling: x tile DMA pipelines behind compute; TB kept modest so the
    # double-buffered tiles fit comfortably inside the 32 MiB scoped-VMEM
    # default on every generation (incl. v7x's 64 MiB physical VMEM).
    TB = min(block_rows, _round_up(B, 8))
    B_pad = _round_up(B, TB)
    x_p = x if B_pad == B else jnp.pad(x, ((0, B_pad - B), (0, 0)))

    # Row slices in-kernel instead of an on-chip transpose.
    w2t = jnp.transpose(w2)               # (2, H)
    b2r = jnp.reshape(b2, (1, 2))

    grid = (B_pad // TB,)
    smem = pl.BlockSpec(memory_space=pltpu.MemorySpace.SMEM)

    out = pl.pallas_call(
        classification_net_kernel,
        grid=grid,
        in_specs=[
            pl.BlockSpec((TB, D), lambda i: (i, 0)),       # x tile (pipelined)
            pl.BlockSpec((D, H), lambda i: (0, 0)),        # w1 (VMEM-resident)
            pl.BlockSpec((1, H), lambda i: (0, 0)),        # b1
            smem,                                          # a1 scalar
            pl.BlockSpec((2, H), lambda i: (0, 0)),        # w2^T
            smem,                                          # b2 scalars
            smem,                                          # a2 scalar
            pl.BlockSpec((2, C_pad), lambda i: (0, 0)),    # fc1 weight (padded)
            pl.BlockSpec((1, C_pad), lambda i: (0, 0)),    # fc1 bias (padded)
        ],
        out_specs=pl.BlockSpec((TB, C_pad), lambda i: (i, 0)),
        out_shape=jax.ShapeDtypeStruct((B_pad, C_pad), jnp.float32),
        compiler_params=pltpu.CompilerParams(
            dimension_semantics=("parallel",),  # megacore-shardable on v7x
        ),
    )(x_p, w1, b1, a1, w2t, b2r, a2, wfc_p, bfc_p)

    return out[:B, :C]


def init_params(key, d_in, hidden, n_classes):
    k1, k2, k3, k4, k5, k6 = jax.random.split(key, 6)
    # deterministic, roughly PyTorch-Linear-scaled init
    w1 = jax.random.uniform(k1, (d_in, hidden), jnp.float32,
                            -1.0 / d_in ** 0.5, 1.0 / d_in ** 0.5)
    b1 = jax.random.uniform(k2, (1, hidden), jnp.float32,
                            -1.0 / d_in ** 0.5, 1.0 / d_in ** 0.5)
    a1 = jnp.full((1, 1), 0.25, jnp.float32)            # nn.PReLU() default
    w2 = jax.random.uniform(k3, (hidden, 2), jnp.float32,
                            -1.0 / hidden ** 0.5, 1.0 / hidden ** 0.5)
    b2 = jax.random.uniform(k4, (1, 2), jnp.float32,
                            -1.0 / hidden ** 0.5, 1.0 / hidden ** 0.5)
    a2 = jnp.full((1, 1), 0.25, jnp.float32)            # ClassificationNet.nonlinear
    wfc = jax.random.uniform(k5, (2, n_classes), jnp.float32,
                             -1.0 / 2 ** 0.5, 1.0 / 2 ** 0.5)
    bfc = jax.random.uniform(k6, (1, n_classes), jnp.float32,
                             -1.0 / 2 ** 0.5, 1.0 / 2 ** 0.5)
    return (w1, b1, a1, w2, b2, a2, wfc, bfc)


def reference_forward(x, params):
    w1, b1, a1, w2, b2, a2, wfc, bfc = params
    h = _prelu(x @ w1 + b1, a1[0, 0])
    emb = h @ w2 + b2
    out = _prelu(emb, a2[0, 0])
    z = out @ wfc + bfc
    return jax.nn.log_softmax(z, axis=-1)


if __name__ == "__main__":
    B, D, H, C = 8, 32, 32, 10
    key = jax.random.PRNGKey(0)
    kx, kp = jax.random.split(key)
    x = jax.random.normal(kx, (B, D), jnp.float32)
    params = init_params(kp, D, H, C)

    scores = jax.block_until_ready(classification_net_forward(x, params))
    ref = reference_forward(x, params)
    assert scores.shape == (B, C)
    assert jnp.allclose(scores, ref, atol=1e-4, rtol=1e-4), "mismatch vs reference"
    # log_softmax rows must exponentiate-sum to 1
    assert jnp.allclose(jnp.sum(jnp.exp(scores), axis=-1), 1.0, atol=1e-4)

    # Exercise the multi-tile grid + batch-padding path with a smaller tile.
    x2 = jax.random.normal(jax.random.PRNGKey(1), (200, D), jnp.float32)
    scores2 = jax.block_until_ready(
        classification_net_forward(x2, params, block_rows=64))
    ref2 = reference_forward(x2, params)
    assert scores2.shape == (200, C)
    assert jnp.allclose(scores2, ref2, atol=1e-4, rtol=1e-4), "tiled mismatch"

    print("KERNEL_OK")
</pallas_src>

<mosaic_0001>
module attributes {stable_mosaic.version = 11 : i64} {
  func.func @classification_net_kernel(%arg0: i32, %arg1: memref<8x32xf32, #tpu.memory_space<vmem>>, %arg2: memref<32x32xf32, #tpu.memory_space<vmem>>, %arg3: memref<1x32xf32, #tpu.memory_space<vmem>>, %arg4: memref<1x1xf32, #tpu.memory_space<smem>>, %arg5: memref<2x32xf32, #tpu.memory_space<vmem>>, %arg6: memref<1x2xf32, #tpu.memory_space<smem>>, %arg7: memref<1x1xf32, #tpu.memory_space<smem>>, %arg8: memref<2x128xf32, #tpu.memory_space<vmem>>, %arg9: memref<1x128xf32, #tpu.memory_space<vmem>>, %arg10: memref<8x128xf32, #tpu.memory_space<vmem>>) attributes {dimension_semantics = [#tpu.dimension_semantics<parallel>], iteration_bounds = array<i64: 1>, scalar_prefetch = 0 : i64, scratch_operands = 0 : i64, tpu.core_type = #tpu.core_type<tc>, window_params = [{transform_indices = @transform_0, window_bounds = array<i64: 8, 32>}, {pipeline_mode = #tpu.pipeline_mode<synchronous>, transform_indices = @transform_1, window_bounds = array<i64: 32, 32>}, {pipeline_mode = #tpu.pipeline_mode<synchronous>, transform_indices = @transform_2, window_bounds = array<i64: 1, 32>}, {transform_indices = @transform_3, window_bounds = array<i64: 1, 1>}, {pipeline_mode = #tpu.pipeline_mode<synchronous>, transform_indices = @transform_4, window_bounds = array<i64: 2, 32>}, {transform_indices = @transform_5, window_bounds = array<i64: 1, 2>}, {transform_indices = @transform_6, window_bounds = array<i64: 1, 1>}, {pipeline_mode = #tpu.pipeline_mode<synchronous>, transform_indices = @transform_7, window_bounds = array<i64: 2, 128>}, {pipeline_mode = #tpu.pipeline_mode<synchronous>, transform_indices = @transform_8, window_bounds = array<i64: 1, 128>}, {transform_indices = @transform_9, window_bounds = array<i64: 8, 128>}]} {
    %c0 = arith.constant 0 : index
    %c0_0 = arith.constant 0 : index
    %0 = memref.load %arg4[%c0, %c0_0] : memref<1x1xf32, #tpu.memory_space<smem>>
    %c0_1 = arith.constant 0 : index
    %c0_2 = arith.constant 0 : index
    %1 = memref.load %arg7[%c0_1, %c0_2] : memref<1x1xf32, #tpu.memory_space<smem>>
    %c0_3 = arith.constant 0 : index
    %c0_4 = arith.constant 0 : index
    %2 = vector.load %arg1[%c0_3, %c0_4] : memref<8x32xf32, #tpu.memory_space<vmem>>, vector<8x32xf32>
    %c0_5 = arith.constant 0 : index
    %c0_6 = arith.constant 0 : index
    %3 = vector.load %arg2[%c0_5, %c0_6] : memref<32x32xf32, #tpu.memory_space<vmem>>, vector<32x32xf32>
    %cst = arith.constant dense<0.000000e+00> : vector<8x32xf32>
    %4 = tpu.matmul %2, %3, %cst {dimension_numbers = #tpu.dot_dimension_numbers<[1], [0], [0], [1], [0, 0, 1, 1], [], []>} : vector<8x32xf32>, vector<32x32xf32>, vector<8x32xf32> -> vector<8x32xf32>
    %c0_7 = arith.constant 0 : index
    %c0_8 = arith.constant 0 : index
    %5 = vector.load %arg3[%c0_7, %c0_8] : memref<1x32xf32, #tpu.memory_space<vmem>>, vector<1x32xf32>
    %6 = vector.broadcast %5 : vector<1x32xf32> to vector<8x32xf32>
    %7 = arith.addf %4, %6 : vector<8x32xf32>
    %cst_9 = arith.constant 0.000000e+00 : f32
    %8 = vector.broadcast %cst_9 : f32 to vector<8x32xf32>
    %9 = arith.cmpf ogt, %7, %8 : vector<8x32xf32>
    %10 = vector.broadcast %0 : f32 to vector<8x32xf32>
    %11 = arith.mulf %10, %7 : vector<8x32xf32>
    %12 = arith.select %9, %7, %11 : vector<8x32xi1>, vector<8x32xf32>
    %c0_10 = arith.constant 0 : index
    %c0_11 = arith.constant 0 : index
    %13 = vector.load %arg5[%c0_10, %c0_11] : memref<2x32xf32, #tpu.memory_space<vmem>>, vector<2x32xf32>
    %14 = vector.extract_strided_slice %13 {offsets = [0, 0], sizes = [1, 32], strides = [1, 1]} : vector<2x32xf32> to vector<1x32xf32>
    %15 = vector.broadcast %14 : vector<1x32xf32> to vector<8x32xf32>
    %16 = arith.mulf %12, %15 : vector<8x32xf32>
    %cst_12 = arith.constant dense<0.000000e+00> : vector<8xf32>
    %17 = vector.multi_reduction <add>, %16, %cst_12 [1] : vector<8x32xf32> to vector<8xf32>
    %18 = vector.shape_cast %17 : vector<8xf32> to vector<8x1xf32>
    %c0_13 = arith.constant 0 : index
    %c0_14 = arith.constant 0 : index
    %19 = memref.load %arg6[%c0_13, %c0_14] : memref<1x2xf32, #tpu.memory_space<smem>>
    %20 = vector.broadcast %19 : f32 to vector<8x1xf32>
    %21 = arith.addf %18, %20 : vector<8x1xf32>
    %22 = vector.extract_strided_slice %13 {offsets = [1, 0], sizes = [1, 32], strides = [1, 1]} : vector<2x32xf32> to vector<1x32xf32>
    %23 = vector.broadcast %22 : vector<1x32xf32> to vector<8x32xf32>
    %24 = arith.mulf %12, %23 : vector<8x32xf32>
    %cst_15 = arith.constant dense<0.000000e+00> : vector<8xf32>
    %25 = vector.multi_reduction <add>, %24, %cst_15 [1] : vector<8x32xf32> to vector<8xf32>
    %26 = vector.shape_cast %25 : vector<8xf32> to vector<8x1xf32>
    %c0_16 = arith.constant 0 : index
    %c1 = arith.constant 1 : index
    %27 = memref.load %arg6[%c0_16, %c1] : memref<1x2xf32, #tpu.memory_space<smem>>
    %28 = vector.broadcast %27 : f32 to vector<8x1xf32>
    %29 = arith.addf %26, %28 : vector<8x1xf32>
    %cst_17 = arith.constant 0.000000e+00 : f32
    %30 = vector.broadcast %cst_17 : f32 to vector<8x1xf32>
    %31 = arith.cmpf ogt, %21, %30 : vector<8x1xf32>
    %32 = vector.broadcast %1 : f32 to vector<8x1xf32>
    %33 = arith.mulf %32, %21 : vector<8x1xf32>
    %34 = arith.select %31, %21, %33 : vector<8x1xi1>, vector<8x1xf32>
    %cst_18 = arith.constant 0.000000e+00 : f32
    %35 = vector.broadcast %cst_18 : f32 to vector<8x1xf32>
    %36 = arith.cmpf ogt, %29, %35 : vector<8x1xf32>
    %37 = vector.broadcast %1 : f32 to vector<8x1xf32>
    %38 = arith.mulf %37, %29 : vector<8x1xf32>
    %39 = arith.select %36, %29, %38 : vector<8x1xi1>, vector<8x1xf32>
    %c0_19 = arith.constant 0 : index
    %c0_20 = arith.constant 0 : index
    %40 = vector.load %arg8[%c0_19, %c0_20] : memref<2x128xf32, #tpu.memory_space<vmem>>, vector<2x128xf32>
    %41 = vector.extract_strided_slice %40 {offsets = [0, 0], sizes = [1, 128], strides = [1, 1]} : vector<2x128xf32> to vector<1x128xf32>
    %42 = vector.broadcast %34 : vector<8x1xf32> to vector<8x128xf32>
    %43 = vector.broadcast %41 : vector<1x128xf32> to vector<8x128xf32>
    %44 = arith.mulf %42, %43 : vector<8x128xf32>
    %45 = vector.extract_strided_slice %40 {offsets = [1, 0], sizes = [1, 128], strides = [1, 1]} : vector<2x128xf32> to vector<1x128xf32>
    %46 = vector.broadcast %39 : vector<8x1xf32> to vector<8x128xf32>
    %47 = vector.broadcast %45 : vector<1x128xf32> to vector<8x128xf32>
    %48 = arith.mulf %46, %47 : vector<8x128xf32>
    %49 = arith.addf %44, %48 : vector<8x128xf32>
    %c0_21 = arith.constant 0 : index
    %c0_22 = arith.constant 0 : index
    %50 = vector.load %arg9[%c0_21, %c0_22] : memref<1x128xf32, #tpu.memory_space<vmem>>, vector<1x128xf32>
    %51 = vector.broadcast %50 : vector<1x128xf32> to vector<8x128xf32>
    %52 = arith.addf %49, %51 : vector<8x128xf32>
    %cst_23 = arith.constant dense<0xFF800000> : vector<8xf32>
    %53 = vector.multi_reduction <maximumf>, %52, %cst_23 [1] : vector<8x128xf32> to vector<8xf32>
    %54 = vector.shape_cast %53 : vector<8xf32> to vector<8x1xf32>
    %55 = vector.broadcast %54 : vector<8x1xf32> to vector<8x128xf32>
    %56 = arith.subf %52, %55 : vector<8x128xf32>
    %57 = math.exp %56 : vector<8x128xf32>
    %cst_24 = arith.constant dense<0.000000e+00> : vector<8xf32>
    %58 = vector.multi_reduction <add>, %57, %cst_24 [1] : vector<8x128xf32> to vector<8xf32>
    %59 = vector.shape_cast %58 : vector<8xf32> to vector<8x1xf32>
    %60 = math.log %59 : vector<8x1xf32>
    %61 = arith.addf %54, %60 : vector<8x1xf32>
    %62 = vector.broadcast %61 : vector<8x1xf32> to vector<8x128xf32>
    %63 = arith.subf %52, %62 : vector<8x128xf32>
    %c0_25 = arith.constant 0 : index
    %c0_26 = arith.constant 0 : index
    %64 = vector.load %arg10[%c0_25, %c0_26] : memref<8x128xf32, #tpu.memory_space<vmem>>, vector<8x128xf32>
    tpu.vector_store %arg10[%c0_25, %c0_26], %63 {strides = array<i32>} : memref<8x128xf32, #tpu.memory_space<vmem>>, vector<8x128xf32>,
    return
  }
  func.func @transform_0(%arg0: i32) -> (i32, i32) {
    %c0_i32 = arith.constant 0 : i32
    %c0_i32_0 = arith.constant 0 : i32
    return %arg0, %c0_i32 : i32, i32
  }
  func.func @transform_1(%arg0: i32) -> (i32, i32) {
    %c0_i32 = arith.constant 0 : i32
    %c0_i32_0 = arith.constant 0 : i32
    %c0_i32_1 = arith.constant 0 : i32
    return %c0_i32, %c0_i32_0 : i32, i32
  }
  func.func @transform_2(%arg0: i32) -> (i32, i32) {
    %c0_i32 = arith.constant 0 : i32
    %c0_i32_0 = arith.constant 0 : i32
    %c0_i32_1 = arith.constant 0 : i32
    return %c0_i32, %c0_i32_0 : i32, i32
  }
  func.func @transform_3(%arg0: i32) -> (i32, i32) {
    %c0_i32 = arith.constant 0 : i32
    %c0_i32_0 = arith.constant 0 : i32
    %c0_i32_1 = arith.constant 0 : i32
    return %c0_i32, %c0_i32_0 : i32, i32
  }
  func.func @transform_4(%arg0: i32) -> (i32, i32) {
    %c0_i32 = arith.constant 0 : i32
    %c0_i32_0 = arith.constant 0 : i32
    %c0_i32_1 = arith.constant 0 : i32
    return %c0_i32, %c0_i32_0 : i32, i32
  }
  func.func @transform_5(%arg0: i32) -> (i32, i32) {
    %c0_i32 = arith.constant 0 : i32
    %c0_i32_0 = arith.constant 0 : i32
    %c0_i32_1 = arith.constant 0 : i32
    return %c0_i32, %c0_i32_0 : i32, i32
  }
  func.func @transform_6(%arg0: i32) -> (i32, i32) {
    %c0_i32 = arith.constant 0 : i32
    %c0_i32_0 = arith.constant 0 : i32
    %c0_i32_1 = arith.constant 0 : i32
    return %c0_i32, %c0_i32_0 : i32, i32
  }
  func.func @transform_7(%arg0: i32) -> (i32, i32) {
    %c0_i32 = arith.constant 0 : i32
    %c0_i32_0 = arith.constant 0 : i32
    %c0_i32_1 = arith.constant 0 : i32
    return %c0_i32, %c0_i32_0 : i32, i32
  }
  func.func @transform_8(%arg0: i32) -> (i32, i32) {
    %c0_i32 = arith.constant 0 : i32
    %c0_i32_0 = arith.constant 0 : i32
    %c0_i32_1 = arith.constant 0 : i32
    return %c0_i32, %c0_i32_0 : i32, i32
  }
  func.func @transform_9(%arg0: i32) -> (i32, i32) {
    %c0_i32 = arith.constant 0 : i32
    %c0_i32_0 = arith.constant 0 : i32
    return %arg0, %c0_i32 : i32, i32
  }
}

</mosaic_0001>

<llo_original>
// kernel: tpu_custom_call.1
$region0: #{tpu_custom_call.1}
  #allocation0 [shape = 'u32[]', space=smem, size = 0x4, offset = 0x4, fixed_abs, tag = 'smem constant byte address 0x4 - core index']
  #allocation1 [shape = 'u32[144,128]{1,0:T(1,128)}', space=vmem, size = 0x12000, scoped, tag = 'internal scratch']
  #allocation2 [shape = 'f32[1,1]{1,0:T(1,128)S(6)}', space=smem, size = 0x200, scoped, tag = 'scoped memory for tpu_custom_call.1']
  #allocation3 [shape = 'f32[1,1]{1,0:T(1,128)S(6)}', space=smem, size = 0x200, scoped, tag = 'scoped memory for tpu_custom_call.1']
  %s0 = inlined_call_operand.hbm [shape: f32[8,32], index: 0, kind: input, shape index: {}]
  %s1 = inlined_call_operand.hbm [shape: f32[32,32], index: 1, kind: input, shape index: {}]
  %s2 = inlined_call_operand.vmem [shape: f32[1,32], index: 2, kind: input, shape index: {}]
  %s3 = inlined_call_operand.<no memory space> [shape: f32[1,1], index: 3, kind: input, shape index: {}]
  %s4 = inlined_call_operand.vmem [shape: f32[2,32], index: 4, kind: input, shape index: {}]
  %s5 = inlined_call_operand.vmem [shape: f32[1,2], index: 5, kind: input, shape index: {}]
  %s6 = inlined_call_operand.<no memory space> [shape: f32[1,1], index: 6, kind: input, shape index: {}]
  %s7 = inlined_call_operand.vmem [shape: f32[2,128], index: 7, kind: input, shape index: {}]
  %s8 = inlined_call_operand.vmem [shape: f32[1,128], index: 8, kind: input, shape index: {}]
  %s9 = inlined_call_operand.hbm [shape: f32[8,128], index: 9, kind: output, shape index: {}]
  %s10 = sld [smem:[#allocation0]]
  $region58: #{tpu_custom_call.1} parent=0
    _
  %s12 = ssub.s32 1, %s10
  %s13 = scalar_select 0, %s12, %s10
  %14 = sst [smem:[#allocation2]] %s3
  %15 = sst [smem:[#allocation3]] %s6
  $region1: #{tpu_custom_call.1} parent=0
    #allocation4 [shape = 'u8[4096]{0}', space=vmem, size = 0x1000, scoped, tag = 'input window, operand 0, single buffered']
    #allocation5 [shape = 's32[1]{0}', space=sflag, size = 0x4, scoped, tag = 'scoped memory for tpu_custom_call.1']
    #allocation6 [shape = 's32[1]{0}', space=sflag, size = 0x4, scoped, tag = 'scoped memory for tpu_custom_call.1']
    #allocation7 [shape = 's32[1]{0}', space=sflag, size = 0x4, scoped, tag = 'scoped memory for tpu_custom_call.1']
    #allocation8 [shape = 'u8[16384]{0}', space=vmem, size = 0x4000, scoped, tag = 'input window, operand 1, single buffered']
    #allocation9 [shape = 's32[1]{0}', space=sflag, size = 0x4, scoped, tag = 'scoped memory for tpu_custom_call.1']
    #allocation10 [shape = 'u8[512]{0}', space=smem, size = 0x200, scoped, tag = 'input window, operand 5, single buffered']
    #allocation11 [shape = 'u8[4096]{0}', space=vmem, size = 0x1000, scoped, tag = 'output window, operand 0, single buffered']
    %16 = vsyncpa [#allocation5], 0
    %17 = vsyncpa [#allocation9], 0
    %18 = vsyncpa [#allocation7], 0
    %19 = vsyncpa [#allocation6], 0
    // Predicated region
    $region2: #{tpu_custom_call.1} parent=1 // pred_check
      _
    $region3: #{tpu_custom_call.1} parent=1 // pred_check_branch
      %21 = sbr.rel (0) target = $region5
    $region4: #{tpu_custom_call.1} parent=1 // pred_region
      %s23 = ssub.s32 128, 128
      %24 = vsyncadd [#allocation5], %s23
      %s26 = sshll.u32 [#allocation4], 4
      %s27 = int_to_ptr.vmem [resolvable:$true] %s26
      %29 = dma.hbm_to_vmem [thread:$0]  %s0, 128, %s27, [#allocation5]
    $region5: #{tpu_custom_call.1} parent=1 // pred_fallthru
      _
    // Predicated region
    $region6: #{tpu_custom_call.1} parent=1 // pred_check
      _
    $region7: #{tpu_custom_call.1} parent=1 // pred_check_branch
      %31 = sbr.rel (0) target = $region9
    $region8: #{tpu_custom_call.1} parent=1 // pred_region
      %s33 = ssub.s32 512, 512
      %34 = vsyncadd [#allocation9], %s33
      %s35 = sshll.u32 [#allocation8], 4
      %s36 = int_to_ptr.vmem [resolvable:$true] %s35
      %41 = dma.hbm_to_vmem [thread:$0]  %s1, 512, %s36, [#allocation9], 128, 128, 8
    $region9: #{tpu_custom_call.1} parent=1 // pred_fallthru
      _
    // Predicated region
    $region10: #{tpu_custom_call.1} parent=1 // pred_check
      _
    $region11: #{tpu_custom_call.1} parent=1 // pred_check_branch
      %43 = sbr.rel (0) target = $region13
    $region12: #{tpu_custom_call.1} parent=1 // pred_region
      _
    $region13: #{tpu_custom_call.1} parent=1 // pred_fallthru
      _
    // Predicated region
    $region14: #{tpu_custom_call.1} parent=1 // pred_check
      _
    $region15: #{tpu_custom_call.1} parent=1 // pred_check_branch
      %45 = sbr.rel (0) target = $region17
    $region16: #{tpu_custom_call.1} parent=1 // pred_region
      _
    $region17: #{tpu_custom_call.1} parent=1 // pred_fallthru
      _
    // Predicated region
    $region18: #{tpu_custom_call.1} parent=1 // pred_check
      _
    $region19: #{tpu_custom_call.1} parent=1 // pred_check_branch
      %47 = sbr.rel (0) target = $region21
    $region20: #{tpu_custom_call.1} parent=1 // pred_region
      _
    $region21: #{tpu_custom_call.1} parent=1 // pred_fallthru
      _
    // Predicated region
    $region22: #{tpu_custom_call.1} parent=1 // pred_check
      _
    $region23: #{tpu_custom_call.1} parent=1 // pred_check_branch
      %49 = sbr.rel (0) target = $region25
    $region24: #{tpu_custom_call.1} parent=1 // pred_region
      %s51 = ssub.s32 16, 16
      %52 = vsyncadd [#allocation7], %s51
      %s54 = sshll.u32 %s5, 4
      %s55 = int_to_ptr.vmem [resolvable:$true] %s54
      %57 = dma.vmem_to_smem %s55, 16, [#allocation10], [#allocation7]
    $region25: #{tpu_custom_call.1} parent=1 // pred_fallthru
      _
    // Predicated region
    $region26: #{tpu_custom_call.1} parent=1 // pred_check
      _
    $region27: #{tpu_custom_call.1} parent=1 // pred_check_branch
      %59 = sbr.rel (0) target = $region29
    $region28: #{tpu_custom_call.1} parent=1 // pred_region
      _
    $region29: #{tpu_custom_call.1} parent=1 // pred_fallthru
      _
    // Predicated region
    $region30: #{tpu_custom_call.1} parent=1 // pred_check
      _
    $region31: #{tpu_custom_call.1} parent=1 // pred_check_branch
      %61 = sbr.rel (0) target = $region33
    $region32: #{tpu_custom_call.1} parent=1 // pred_region
      _
    $region33: #{tpu_custom_call.1} parent=1 // pred_fallthru
      _
    // Predicated region
    $region34: #{tpu_custom_call.1} parent=1 // pred_check
      _
    $region35: #{tpu_custom_call.1} parent=1 // pred_check_branch
      %63 = sbr.rel (0) target = $region37
    $region36: #{tpu_custom_call.1} parent=1 // pred_region
      _
    $region37: #{tpu_custom_call.1} parent=1 // pred_fallthru
      _
    // Predicated region
    $region38: #{tpu_custom_call.1} parent=1 // pred_check
      _
    $region39: #{tpu_custom_call.1} parent=1 // pred_check_branch
      %65 = sbr.rel (0) target = $region41
    $region40: #{tpu_custom_call.1} parent=1 // pred_region
      %66 = dma.done [#allocation5], 128
    $region41: #{tpu_custom_call.1} parent=1 // pred_fallthru
      _
    // Predicated region
    $region42: #{tpu_custom_call.1} parent=1 // pred_check
      _
    $region43: #{tpu_custom_call.1} parent=1 // pred_check_branch
      %68 = sbr.rel (0) target = $region45
    $region44: #{tpu_custom_call.1} parent=1 // pred_region
      %69 = dma.done [#allocation9], 512
    $region45: #{tpu_custom_call.1} parent=1 // pred_fallthru
      _
    // Predicated region
    $region46: #{tpu_custom_call.1} parent=1 // pred_check
      _
    $region47: #{tpu_custom_call.1} parent=1 // pred_check_branch
      %71 = sbr.rel (0) target = $region49
    $region48: #{tpu_custom_call.1} parent=1 // pred_region
      %72 = dma.done [#allocation7], 16
    $region49: #{tpu_custom_call.1} parent=1 // pred_fallthru
      _
    %73 = sfence
    %s74 = sld [smem:[#allocation2]]
    %s75 = sld [smem:[#allocation3]]
    %v76 = vld [vmem:[#allocation4] sm:$0xff]
    %v77 = vld [vmem:[#allocation8] sm:$0xff]
    %v78 = vld [vmem:[#allocation8 + $0x8] sm:$0xff]
    %v79 = vld [vmem:[#allocation8 + $0x10] sm:$0xff]
    %v80 = vld [vmem:[#allocation8 + $0x18] sm:$0xff]
    %v81 = vld [vmem:[%s2] sm:$0x1]
    %v83 = vlaneseq
    %v84 = vshrl.u32 %v83, 7
    %v85 = vsub.s32 0, %v84
    %v86 = vrot.slane %v81, %v85
    %vm88 = vcmask 261120
    %v90 = vsel %vm88, %v76, 0
    %92 = vmatprep.subr.mxu0 0.0
    %93 = vmatpush1.msra.mxu0 %v77
    %94 = vmatprep.subr.mxu0 0.0
    %95 = vmatpush1.msra.mxu0 %v78
    %96 = vmatprep.subr.mxu0 0.0
    %97 = vmatpush1.msra.mxu0 %v79
    %98 = vmatprep.subr.mxu0 0.0
    %99 = vmatpush1.msra.mxu0 %v80
    %100 = vmatprep.subr.mxu0 0.0
    %101 = vmatpush1.msra.mxu0 0.0
    %102 = vmatprep.subr.mxu0 0.0
    %103 = vmatpush1.msra.mxu0 0.0
    %104 = vmatprep.subr.mxu0 0.0
    %105 = vmatpush1.msra.mxu0 0.0
    %106 = vmatprep.subr.mxu0 0.0
    %107 = vmatpush1.msra.mxu0 0.0
    %108 = vmatprep.subr.mxu0 0.0
    %109 = vmatpush1.msra.mxu0 0.0
    %110 = vmatprep.subr.mxu0 0.0
    %111 = vmatpush1.msra.mxu0 0.0
    %112 = vmatprep.subr.mxu0 0.0
    %113 = vmatpush1.msra.mxu0 0.0
    %114 = vmatprep.subr.mxu0 0.0
    %115 = vmatpush1.msra.mxu0 0.0
    %116 = vmatprep.subr.mxu0 0.0
    %117 = vmatpush1.msra.mxu0 0.0
    %118 = vmatprep.subr.mxu0 0.0
    %119 = vmatpush1.msra.mxu0 0.0
    %120 = vmatprep.subr.mxu0 0.0
    %121 = vmatpush1.msra.mxu0 0.0
    %122 = vmatprep.subr.mxu0 0.0
    %123 = vmatpush1.msra.mxu0 0.0
    %124 = vmatprep.subr.mxu0 0.0
    %125 = vmatpush1.msra.mxu0 0.0
    %126 = vmatprep.subr.mxu0 0.0
    %127 = vmatpush1.msra.mxu0 0.0
    %128 = vmatprep.subr.mxu0 0.0
    %129 = vmatpush1.msra.mxu0 0.0
    %130 = vmatprep.subr.mxu0 0.0
    %131 = vmatpush1.msra.mxu0 0.0
    %132 = vmatprep.subr.mxu0 0.0
    %133 = vmatpush1.msra.mxu0 0.0
    %134 = vmatprep.subr.mxu0 0.0
    %135 = vmatpush1.msra.mxu0 0.0
    %136 = vmatprep.subr.mxu0 0.0
    %137 = vmatpush1.msra.mxu0 0.0
    %138 = vmatprep.subr.mxu0 0.0
    %139 = vmatpush1.msra.mxu0 0.0
    %140 = vmatprep.subr.mxu0 0.0
    %141 = vmatpush1.msra.mxu0 0.0
    %142 = vmatprep.subr.mxu0 0.0
    %143 = vmatpush1.msra.mxu0 0.0
    %144 = vmatprep.subr.mxu0 0.0
    %145 = vmatpush1.msra.mxu0 0.0
    %146 = vmatprep.subr.mxu0 0.0
    %147 = vmatpush1.msra.mxu0 0.0
    %148 = vmatprep.subr.mxu0 0.0
    %149 = vmatpush1.msra.mxu0 0.0
    %150 = vmatprep.subr.mxu0 0.0
    %151 = vmatpush1.msra.mxu0 0.0
    %152 = vmatprep.subr.mxu0 0.0
    %153 = vmatpush1.msra.mxu0 0.0
    %154 = vmatprep.subr.mxu0 0.0
    %155 = vmatpush1.msra.mxu0 0.0
    %156 = vmatprep.mubr.f32.mxu0 0.0
    %157 = vmatmul.mubr.f32.gmra.mrb[0].mxu0 %v90
    %v158 = vpop.f32.mrb[0].mxu0
    %v159 = vadd.f32 %v86, %v158
    %v160 = vpop.f32.mrb[0].mxu0
    %161 = vdwg.mxu0
    %vm162 = vcmp.gt.f32.partialorder %v159, 0.0
    %v163 = vstv %s74
    %v164 = vmul.f32 %v163, %v159
    %v165 = vsel %vm162, %v159, %v164
    %v166 = vld [vmem:[%s4] sm:$0x3]
    %v167 = vlaneseq
    %v168 = vshrl.u32 %v167, 7
    %v169 = vsub.s32 0, %v168
    %v170 = vrot.slane %v166, %v169
    %v171 = vmul.f32 %v165, %v170
    %v172 = vsel %vm88, %v171, 0.0
    %173 = vadd.xlane.f32.xlu0 %v172
    %v174 = vpop.xlane.xlu0 %173
    %s175 = sld [smem:[#allocation10]]
    %v176 = vstv %s175
    %v177 = vadd.f32 %v174, %v176
    %v178 = vlaneseq
    %v179 = vshrl.u32 %v178, 7
    %v180 = vsub.s32 1, %v179
    %v181 = vrot.slane %v166, %v180
    %v182 = vmul.f32 %v165, %v181
    %v183 = vsel %vm88, %v182, 0.0
    %184 = vadd.xlane.f32.xlu0 %v183
    %v185 = vpop.xlane.xlu0 %184
    %s186 = sld [smem:[#allocation10 + $0x1]]
    %v187 = vstv %s186
    %v188 = vadd.f32 %v185, %v187
    %vm189 = vcmp.gt.f32.partialorder %v177, 0.0
    %v190 = vstv %s75
    %v191 = vmul.f32 %v190, %v177
    %v192 = vsel %vm189, %v177, %v191
    %vm193 = vcmp.gt.f32.partialorder %v188, 0.0
    %v194 = vmul.f32 %v190, %v188
    %v195 = vsel %vm193, %v188, %v194
    %v196 = vld [vmem:[%s7] sm:$0x3]
    %v197 = vlaneseq
    %v198 = vshrl.u32 %v197, 7
    %v199 = vsub.s32 0, %v198
    %v200 = vrot.slane %v196, %v199
    %v201 = vmul.f32 %v192, %v200
    %v202 = vlaneseq
    %v203 = vshrl.u32 %v202, 7
    %v204 = vsub.s32 1, %v203
    %v205 = vrot.slane %v196, %v204
    %v206 = vmul.f32 %v195, %v205
    %v207 = vadd.f32 %v201, %v206
    %v208 = vld [vmem:[%s8] sm:$0x1]
    %v210 = vlaneseq
    %v211 = vshrl.u32 %v210, 7
    %v212 = vsub.s32 0, %v211
    %v213 = vrot.slane %v208, %v212
    %v215 = vadd.f32 %v207, %v213
    %216 = vmax.xlane.f32.xlu0 %v215
    %v217 = vpop.xlane.xlu0 %216
    %v218 = vsub.f32 %v215, %v217
    %v219 = vmul.f32 %v218, 1.442695
    %v220 = vpow.pop %v219
    %221 = vadd.xlane.f32.xlu0 %v220
    %v222 = vpop.xlane.xlu0 %221
    %v223 = vlog2.pop %v222
    %v224 = vmul.f32 %v223, 0.6931472
    %v225 = vadd.f32 %v217, %v224
    %v226 = vsub.f32 %v215, %v225
    %227 = vst [vmem:[#allocation11] sm:$0xff] %v226
    // Predicated region
    $region50: #{tpu_custom_call.1} parent=1 // pred_check
      _
    $region51: #{tpu_custom_call.1} parent=1 // pred_check_branch
      %229 = sbr.rel (0) target = $region53
    $region52: #{tpu_custom_call.1} parent=1 // pred_region
      %s231 = ssub.s32 128, 128
      %232 = vsyncadd [#allocation6], %s231
      %s234 = sshll.u32 [#allocation11], 4
      %s235 = int_to_ptr.vmem [resolvable:$true] %s234
      %237 = dma.vmem_to_hbm [thread:$0]  %s235, 128, %s9, [#allocation6]
    $region53: #{tpu_custom_call.1} parent=1 // pred_fallthru
      _
    // Predicated region
    $region54: #{tpu_custom_call.1} parent=1 // pred_check
      _
    $region55: #{tpu_custom_call.1} parent=1 // pred_check_branch
      %239 = sbr.rel (0) target = $region57
    $region56: #{tpu_custom_call.1} parent=1 // pred_region
      %240 = dma.done [#allocation6], 128
    $region57: #{tpu_custom_call.1} parent=1 // pred_fallthru
      _
    %241 = vsyncpa [#allocation5], 1
    %242 = vsyncpa [#allocation9], 1
    %243 = vsyncpa [#allocation6], 1
    %244 = vsyncpa [#allocation7], 1

</llo_original>
